<compile_context>
chip_gen: v7x
topology: tpu7x:2x2x1
jax: 0.10.0
libtpu: 0.0.40
codegen_flags: <defaults>
</compile_context>

<pallas_src>
import jax
import jax.numpy as jnp
from jax.experimental import pallas as pl
from jax.experimental.pallas import tpu as pltpu

# ------------------------------ problem sizes --------------------------------
QUERY_DIM = 128        # hidden size (multiple of 128 -> unmasked lane-dense stores)
KEY_DIM = 64           # other-modality feature dim
KEY_DIM_PAD = 128      # zero-padded contraction dim (full lanes)
B = 512                # batch (amortizes launch/weight DMA; 2 row tiles)
TILE_B = 256           # rows per grid step


# ------------------------------ fused kernel ---------------------------------
def _cross_modal_attention_kernel(kv_ref, w_ref, b_ref, o_ref):
    """out = key_value @ (Wv @ Wo) + (bv @ Wo + bo).

    Exactly equal to the PyTorch forward at inference: softmax over the length-1
    attention axis is 1.0, so attended == value_proj(key_value) and the q/k path
    never influences the output.  Single bf16 MXU matmul, f32 accumulation,
    f32 bias add, lane-dense f32 store.
    """
    x_kv = kv_ref[...].astype(jnp.bfloat16)                    # (TILE_B, 128) bf16 MXU operand
    o_ref[...] = (jnp.dot(x_kv, w_ref[...],
                          preferred_element_type=jnp.float32)  # (TILE_B, 128) f32
                  + b_ref[...])


# ------------------------------ wrapper ---------------------------------------
def cross_modal_attention(params, query, key_value):
    """query: (B, QUERY_DIM) f32, key_value: (B, KEY_DIM) f32 -> (B, QUERY_DIM) f32."""
    del query  # mathematically dead: softmax over the length-1 attention axis == 1.0
    bsz, kdim = key_value.shape

    # Pad batch to a multiple of TILE_B and the key dim to full 128 lanes (zeros, so
    # the zero-padded rows of W_fold contribute exactly 0 to the accumulation).
    pad_b = (-bsz) % TILE_B
    kv = jnp.pad(key_value, ((0, pad_b), (0, KEY_DIM_PAD - kdim)))
    padded_b = bsz + pad_b

    out = pl.pallas_call(
        _cross_modal_attention_kernel,
        out_shape=jax.ShapeDtypeStruct((padded_b, QUERY_DIM), jnp.float32),
        grid_spec=pltpu.PrefetchScalarGridSpec(
            num_scalar_prefetch=0,
            grid=(padded_b // TILE_B,),
            in_specs=[
                pl.BlockSpec((TILE_B, KEY_DIM_PAD), lambda i: (i, 0)),   # kv row tile
                pl.BlockSpec((KEY_DIM_PAD, QUERY_DIM), lambda i: (0, 0)),  # folded weight (resident)
                pl.BlockSpec((1, QUERY_DIM), lambda i: (0, 0)),            # folded bias (resident)
            ],
            out_specs=pl.BlockSpec((TILE_B, QUERY_DIM), lambda i: (i, 0)),
        ),
        compiler_params=pltpu.CompilerParams(
            dimension_semantics=("parallel",)),   # shards row tiles across v7x's 2 TCs
    )(kv, params["W_fold"], params["b_fold"])

    return out[:bsz]


# ------------------------------ parameters ------------------------------------
def init_params(key):
    """nn.Linear-style params (f32 masters), plus the folded inference-time params.

    Weights are stored pre-transposed as (in, out).  The fold is done in f32 and cast
    to bf16 once; the folded bias stays f32.
    """
    ks = jax.random.split(key, 8)

    def lin(kw, kb, din, dout):
        w = 0.02 * jax.random.normal(kw, (din, dout), jnp.float32)
        b = 0.02 * jax.random.normal(kb, (1, dout), jnp.float32)
        return w, b

    Wq, bq = lin(ks[0], ks[1], QUERY_DIM, QUERY_DIM)
    Wk, bk = lin(ks[2], ks[3], KEY_DIM, QUERY_DIM)
    Wv, bv = lin(ks[4], ks[5], KEY_DIM, QUERY_DIM)
    Wo, bo = lin(ks[6], ks[7], QUERY_DIM, QUERY_DIM)

    # Fold: out = (kv @ Wv + bv) @ Wo + bo = kv @ (Wv @ Wo) + (bv @ Wo + bo).
    W_fold = Wv @ Wo                     # (KEY_DIM, QUERY_DIM) f32
    b_fold = bv @ Wo + bo                # (1, QUERY_DIM) f32
    # Zero-pad contraction rows 64 -> 128 so the kv tile is full-lane; cast once to bf16.
    W_fold = jnp.pad(W_fold, ((0, KEY_DIM_PAD - KEY_DIM), (0, 0))).astype(jnp.bfloat16)

    return {
        # full module params (kept for the reference / a future training path)
        "Wq": Wq, "bq": bq, "Wk": Wk, "bk": bk,
        "Wv": Wv, "bv": bv, "Wo": Wo, "bo": bo,
        # folded params actually consumed by the kernel
        "W_fold": W_fold, "b_fold": b_fold,
    }


# ------------------------------ f32 reference ----------------------------------
def reference_forward(params, query, key_value):
    """Literal port of the PyTorch forward (f32, eval-mode dropout)."""
    q = query @ params["Wq"] + params["bq"]
    k = key_value @ params["Wk"] + params["bk"]
    v = key_value @ params["Wv"] + params["bv"]
    scores = jnp.sum(q * k, axis=-1, keepdims=True) / (QUERY_DIM ** 0.5)
    attn = jax.nn.softmax(scores, axis=-1)          # length-1 axis -> all ones
    attended = attn * v
    return attended @ params["Wo"] + params["bo"]


# ------------------------------ main -------------------------------------------
if __name__ == "__main__":
    key = jax.random.PRNGKey(0)
    k_param, k_query, k_kv = jax.random.split(key, 3)

    params = init_params(k_param)
    query = jax.random.normal(k_query, (B, QUERY_DIM), jnp.float32)
    key_value = jax.random.normal(k_kv, (B, KEY_DIM), jnp.float32)

    out = jax.jit(cross_modal_attention)(params, query, key_value)
    jax.block_until_ready(out)

    ref = reference_forward(params, query, key_value)

    assert out.shape == (B, QUERY_DIM)
    assert bool(jnp.all(jnp.isfinite(out)))
    assert bool(jnp.allclose(out, ref, atol=3e-2, rtol=0.0))  # bf16-weight tolerance
    print("KERNEL_OK")
</pallas_src>

<mosaic_0001>
module attributes {stable_mosaic.version = 11 : i64} {
  func.func @_cross_modal_attention_kernel(%arg0: i32, %arg1: memref<256x128xf32, #tpu.memory_space<vmem>>, %arg2: memref<128x128xbf16, #tpu.memory_space<vmem>>, %arg3: memref<1x128xf32, #tpu.memory_space<vmem>>, %arg4: memref<256x128xf32, #tpu.memory_space<vmem>>) attributes {dimension_semantics = [#tpu.dimension_semantics<parallel>], iteration_bounds = array<i64: 2>, scalar_prefetch = 0 : i64, scratch_operands = 0 : i64, tpu.core_type = #tpu.core_type<tc>, window_params = [{transform_indices = @transform_0, window_bounds = array<i64: 256, 128>}, {pipeline_mode = #tpu.pipeline_mode<synchronous>, transform_indices = @transform_1, window_bounds = array<i64: 128, 128>}, {pipeline_mode = #tpu.pipeline_mode<synchronous>, transform_indices = @transform_2, window_bounds = array<i64: 1, 128>}, {transform_indices = @transform_3, window_bounds = array<i64: 256, 128>}]} {
    %c0 = arith.constant 0 : index
    %c0_0 = arith.constant 0 : index
    %0 = vector.load %arg1[%c0, %c0_0] : memref<256x128xf32, #tpu.memory_space<vmem>>, vector<256x128xf32>
    %1 = arith.truncf %0 : vector<256x128xf32> to vector<256x128xbf16>
    %c0_1 = arith.constant 0 : index
    %c0_2 = arith.constant 0 : index
    %2 = vector.load %arg2[%c0_1, %c0_2] : memref<128x128xbf16, #tpu.memory_space<vmem>>, vector<128x128xbf16>
    %cst = arith.constant dense<0.000000e+00> : vector<256x128xf32>
    %3 = tpu.matmul %1, %2, %cst {dimension_numbers = #tpu.dot_dimension_numbers<[1], [0], [0], [1], [0, 0, 1, 1], [], []>} : vector<256x128xbf16>, vector<128x128xbf16>, vector<256x128xf32> -> vector<256x128xf32>
    %c0_3 = arith.constant 0 : index
    %c0_4 = arith.constant 0 : index
    %4 = vector.load %arg3[%c0_3, %c0_4] : memref<1x128xf32, #tpu.memory_space<vmem>>, vector<1x128xf32>
    %5 = vector.broadcast %4 : vector<1x128xf32> to vector<256x128xf32>
    %6 = arith.addf %3, %5 : vector<256x128xf32>
    %c0_5 = arith.constant 0 : index
    %c0_6 = arith.constant 0 : index
    %7 = vector.load %arg4[%c0_5, %c0_6] : memref<256x128xf32, #tpu.memory_space<vmem>>, vector<256x128xf32>
    tpu.vector_store %arg4[%c0_5, %c0_6], %6 {strides = array<i32>} : memref<256x128xf32, #tpu.memory_space<vmem>>, vector<256x128xf32>,
    return
  }
  func.func @transform_0(%arg0: i32) -> (i32, i32) {
    %c0_i32 = arith.constant 0 : i32
    %c0_i32_0 = arith.constant 0 : i32
    return %arg0, %c0_i32 : i32, i32
  }
  func.func @transform_1(%arg0: i32) -> (i32, i32) {
    %c0_i32 = arith.constant 0 : i32
    %c0_i32_0 = arith.constant 0 : i32
    %c0_i32_1 = arith.constant 0 : i32
    return %c0_i32, %c0_i32_0 : i32, i32
  }
  func.func @transform_2(%arg0: i32) -> (i32, i32) {
    %c0_i32 = arith.constant 0 : i32
    %c0_i32_0 = arith.constant 0 : i32
    %c0_i32_1 = arith.constant 0 : i32
    return %c0_i32, %c0_i32_0 : i32, i32
  }
  func.func @transform_3(%arg0: i32) -> (i32, i32) {
    %c0_i32 = arith.constant 0 : i32
    %c0_i32_0 = arith.constant 0 : i32
    return %arg0, %c0_i32 : i32, i32
  }
}

</mosaic_0001>

<llo_original>
// kernel: cross_modal_attention.1
$region0: #{cross_modal_attention.1}
  #allocation0 [shape = 'u32[]', space=smem, size = 0x4, offset = 0x4, fixed_abs, tag = 'smem constant byte address 0x4 - core index']
  #allocation1 [shape = 'u32[144,128]{1,0:T(1,128)}', space=vmem, size = 0x12000, scoped, tag = 'internal scratch']
  %s0 = inlined_call_operand.vmem [shape: f32[512,128], index: 0, kind: input, shape index: {}]
  %s1 = inlined_call_operand.vmem [shape: bf16[128,128], index: 1, kind: input, shape index: {}]
  %s2 = inlined_call_operand.vmem [shape: f32[1,128], index: 2, kind: input, shape index: {}]
  %s3 = inlined_call_operand.hbm [shape: f32[512,128], index: 3, kind: output, shape index: {}]
  %s4 = sld [smem:[#allocation0]]
  $region45: #{cross_modal_attention.1} parent=0
    _
  %s6 = ssub.s32 1, %s4
  %s7 = scalar_select 0, %s6, %s4
  $region1: #{cross_modal_attention.1} parent=0
    #allocation2 [shape = 'u8[262144]{0}', space=vmem, size = 0x40000, scoped, tag = 'output window, operand 0']
    #allocation3 [shape = 's32[2]{0}', space=sflag, size = 0x8, scoped, tag = 'scoped memory for cross_modal_attention.1']
    %8 = vsyncpa [#allocation3], 0
    %s9 = scalar_lea.sflag [#allocation3], 1
    %10 = vsyncpa %s9, 0
    loop: start=0, step=1, limit=4
    $region2: #{cross_modal_attention.1} parent=1 // loop_pre_header
      _
    $region3: #{cross_modal_attention.1} parent=1 // loop_header
      %s12 = sphi 0, %s16
      %p13 = scmp.ge.s32.totalorder %s12, 4
      %s22 = sphi 0, %s24
      %s25 = sphi 0, %s22
      %s26 = sphi 0, %s25
      %s42 = sphi 0, %s26
      %s46 = sphi 0, %s46
      %s48 = sphi 0, %s46
      %s49 = sphi 0, %s48
      %s63 = sphi 0, %s49
      %s67 = sphi 0, %s67
      %s69 = sphi 0, %s67
      %s70 = sphi 0, %s69
      %s84 = sphi 0, %s70
      %s90 = sphi 0, %s92
      %s93 = sphi 0, %s90
      %s94 = sphi 0, %s93
      %s110 = sphi 0, %s94
    $region4: #{cross_modal_attention.1} parent=1 // loop_header_branch
      %15 = sbr.rel (%p13) target = $region8
    $region5: #{cross_modal_attention.1} parent=1 // loop_body
      %s17 = ssub.s32 %s12, 1
      %s18 = ssub.s32 %s12, 2
      %s19 = sadd.s32 %s12, 1
      %s20 = ssub.s32 %s12, %s19
      %p21 = scmp.eq.s32.totalorder %s20, 0
      %s23 = sadd.s32 %s22, 1
      %s24 = scalar_select %p21, %s22, %s23
      %p27 = pneg %p21
      %p28 = scmp.eq.s32.totalorder %s12, 1
      %p29 = por %p27, %p28
      %p30 = scmp.ne.s32.totalorder %s22, %s25
      %p31 = scmp.eq.s32.totalorder %s12, 0
      %p32 = por %p30, %p31
      %p33 = scmp.ne.s32.totalorder %s22, %s25
      %p34 = scmp.eq.s32.totalorder %s17, 1
      %p35 = por %p33, %p34
      %p36 = scmp.ne.s32.totalorder %s25, %s26
      %p37 = scmp.eq.s32.totalorder %s17, 0
      %p38 = por %p36, %p37
      %p39 = scmp.ne.s32.totalorder %s25, %s26
      %p40 = scmp.eq.s32.totalorder %s18, 1
      %p41 = por %p39, %p40
      %p43 = scmp.ne.s32.totalorder %s26, %s42
      %p44 = scmp.eq.s32.totalorder %s18, 0
      %p45 = por %p43, %p44
      %s47 = sadd.s32 %s46, 1
      %p50 = scmp.eq.s32.totalorder %s12, 1
      %p51 = scmp.ne.s32.totalorder %s46, %s48
      %p52 = scmp.eq.s32.totalorder %s12, 0
      %p53 = por %p51, %p52
      %p54 = scmp.ne.s32.totalorder %s46, %s48
      %p55 = scmp.eq.s32.totalorder %s17, 1
      %p56 = por %p54, %p55
      %p57 = scmp.ne.s32.totalorder %s48, %s49
      %p58 = scmp.eq.s32.totalorder %s17, 0
      %p59 = por %p57, %p58
      %p60 = scmp.ne.s32.totalorder %s48, %s49
      %p61 = scmp.eq.s32.totalorder %s18, 1
      %p62 = por %p60, %p61
      %p64 = scmp.ne.s32.totalorder %s49, %s63
      %p65 = scmp.eq.s32.totalorder %s18, 0
      %p66 = por %p64, %p65
      %s68 = sadd.s32 %s67, 1
      %p71 = scmp.eq.s32.totalorder %s12, 1
      %p72 = scmp.ne.s32.totalorder %s67, %s69
      %p73 = scmp.eq.s32.totalorder %s12, 0
      %p74 = por %p72, %p73
      %p75 = scmp.ne.s32.totalorder %s67, %s69
      %p76 = scmp.eq.s32.totalorder %s17, 1
      %p77 = por %p75, %p76
      %p78 = scmp.ne.s32.totalorder %s69, %s70
      %p79 = scmp.eq.s32.totalorder %s17, 0
      %p80 = por %p78, %p79
      %p81 = scmp.ne.s32.totalorder %s69, %s70
      %p82 = scmp.eq.s32.totalorder %s18, 1
      %p83 = por %p81, %p82
      %p85 = scmp.ne.s32.totalorder %s70, %s84
      %p86 = scmp.eq.s32.totalorder %s18, 0
      %p87 = por %p85, %p86
      %s88 = ssub.s32 %s12, %s19
      %p89 = scmp.eq.s32.totalorder %s88, 0
      %s91 = sadd.s32 %s90, 1
      %s92 = scalar_select %p89, %s90, %s91
      %p95 = pneg %p89
      %p96 = scmp.eq.s32.totalorder %s12, 1
      %p97 = por %p95, %p96
      %p98 = scmp.ne.s32.totalorder %s90, %s93
      %p99 = scmp.eq.s32.totalorder %s12, 0
      %p100 = por %p98, %p99
      %p101 = scmp.ne.s32.totalorder %s90, %s93
      %p102 = scmp.eq.s32.totalorder %s17, 1
      %p103 = por %p101, %p102
      %p104 = scmp.ne.s32.totalorder %s93, %s94
      %p105 = scmp.eq.s32.totalorder %s17, 0
      %p106 = por %p104, %p105
      %p107 = scmp.ne.s32.totalorder %s93, %s94
      %p108 = scmp.eq.s32.totalorder %s18, 1
      %p109 = por %p107, %p108
      %p111 = scmp.ne.s32.totalorder %s94, %s110
      %p112 = scmp.eq.s32.totalorder %s18, 0
      %p113 = por %p111, %p112
      %p114 = scmp.le.s32.totalorder 1, %s12
      %p115 = scmp.lt.s32.totalorder %s12, 3
      %p116 = pnand %p114, %p115
      %p117 = pneg %p116
      // Predicated region
      $region9: #{cross_modal_attention.1} parent=5 // pred_check
        _
      $region10: #{cross_modal_attention.1} parent=5 // pred_check_branch
        %119 = sbr.rel (%p116) target = $region12
      $region11: #{cross_modal_attention.1} parent=5 // pred_region
        %s120 = ssub.s32 %s12, 1
        // Predicated region
        $region13: #{cross_modal_attention.1} parent=11 // pred_check
          %p121 = pneg %p59
        $region14: #{cross_modal_attention.1} parent=11 // pred_check_branch
          %123 = sbr.rel (%p121) target = $region16
        $region15: #{cross_modal_attention.1} parent=11 // pred_region
          _
        $region16: #{cross_modal_attention.1} parent=11 // pred_fallthru
          _
        // Predicated region
        $region17: #{cross_modal_attention.1} parent=11 // pred_check
          %p124 = pneg %p80
        $region18: #{cross_modal_attention.1} parent=11 // pred_check_branch
          %126 = sbr.rel (%p124) target = $region20
        $region19: #{cross_modal_attention.1} parent=11 // pred_region
          _
        $region20: #{cross_modal_attention.1} parent=11 // pred_fallthru
          _
      $region12: #{cross_modal_attention.1} parent=5 // pred_fallthru
        _
      %p127 = scmp.lt.s32.totalorder %s12, 2
      // Predicated region
      $region21: #{cross_modal_attention.1} parent=5 // pred_check
        %p128 = pneg %p127
      $region22: #{cross_modal_attention.1} parent=5 // pred_check_branch
        %130 = sbr.rel (%p128) target = $region24
      $region23: #{cross_modal_attention.1} parent=5 // pred_region
        // Predicated region
        $region25: #{cross_modal_attention.1} parent=23 // pred_check
          %p131 = pneg %p32
        $region26: #{cross_modal_attention.1} parent=23 // pred_check_branch
          %133 = sbr.rel (%p131) target = $region28
        $region27: #{cross_modal_attention.1} parent=23 // pred_region
          %s134 = smul.u32 32, %s12
          %p135 = scmp.lt.s32.totalorder %s134, 63
          %s136 = scalar_select %p135, %s134, 63
          %s137 = smul.addr %s136, 8
          %s138 = scalar_lea.vmem %s0, %s137
          %s139 = smul.u32 32, %s12
        $region28: #{cross_modal_attention.1} parent=23 // pred_fallthru
          _
      $region24: #{cross_modal_attention.1} parent=5 // pred_fallthru
        _
      %p140 = scmp.le.s32.totalorder 1, %s12
      %p141 = scmp.lt.s32.totalorder %s12, 3
      %p142 = pnand %p140, %p141
      %p143 = pneg %p142
      // Predicated region
      $region29: #{cross_modal_attention.1} parent=5 // pred_check
        _
      $region30: #{cross_modal_attention.1} parent=5 // pred_check_branch
        %145 = sbr.rel (%p142) target = $region32
      $region31: #{cross_modal_attention.1} parent=5 // pred_region
        %s146 = ssub.s32 %s12, 1
        %s147 = smul.u32 32, %s17
        %p148 = scmp.lt.s32.totalorder %s147, 63
        %s149 = scalar_select %p148, %s147, 63
        %s150 = smul.addr %s149, 8
        %s151 = scalar_lea.vmem %s0, %s150
        %p152 = pneg %p38
        %p153 = pneg %p35
        %p154 = pneg %p59
        %p155 = pneg %p56
        %p156 = pneg %p80
        %p157 = pneg %p77
        %p158 = pneg %p106
        %p159 = pneg %p103
        %s160 = sand.u32 %s93, 1
        %s161 = scalar_lea.sflag [#allocation3], %s160
        %s162 = sand.u32 %s93, 1
        %s163 = smul.addr %s162, 256
        %s164 = scalar_lea.vmem [#allocation2], %s163
        %s165 = smul.u32 32, %s17
        %p166 = scmp.lt.s32.totalorder %s165, 63
        %s167 = scalar_select %p166, %s165, 63
        %s168 = smul.addr %s167, 8
        %s169 = scalar_lea.vmem %s0, %s168
        %s170 = smul.u32 32, %s17
        %s171 = smul.u32 32, %s17
        %v173 = vld [vmem:[%s169] sm:$0xff]
        %v174 = vld [vmem:[%s169 + $0x8] sm:$0xff]
        %v175 = vld [vmem:[%s169 + $0x10] sm:$0xff]
        %v176 = vld [vmem:[%s169 + $0x18] sm:$0xff]
        %v177 = vld [vmem:[%s169 + $0x20] sm:$0xff]
        %v178 = vld [vmem:[%s169 + $0x28] sm:$0xff]
        %v179 = vld [vmem:[%s169 + $0x30] sm:$0xff]
        %v180 = vld [vmem:[%s169 + $0x38] sm:$0xff]
        %v181 = vld [vmem:[%s169 + $0x40] sm:$0xff]
        %v182 = vld [vmem:[%s169 + $0x48] sm:$0xff]
        %v183 = vld [vmem:[%s169 + $0x50] sm:$0xff]
        %v184 = vld [vmem:[%s169 + $0x58] sm:$0xff]
        %v185 = vld [vmem:[%s169 + $0x60] sm:$0xff]
        %v186 = vld [vmem:[%s169 + $0x68] sm:$0xff]
        %v187 = vld [vmem:[%s169 + $0x70] sm:$0xff]
        %v188 = vld [vmem:[%s169 + $0x78] sm:$0xff]
        %v189 = vld [vmem:[%s169 + $0x80] sm:$0xff]
        %v190 = vld [vmem:[%s169 + $0x88] sm:$0xff]
        %v191 = vld [vmem:[%s169 + $0x90] sm:$0xff]
        %v192 = vld [vmem:[%s169 + $0x98] sm:$0xff]
        %v193 = vld [vmem:[%s169 + $0xa0] sm:$0xff]
        %v194 = vld [vmem:[%s169 + $0xa8] sm:$0xff]
        %v195 = vld [vmem:[%s169 + $0xb0] sm:$0xff]
        %v196 = vld [vmem:[%s169 + $0xb8] sm:$0xff]
        %v197 = vld [vmem:[%s169 + $0xc0] sm:$0xff]
        %v198 = vld [vmem:[%s169 + $0xc8] sm:$0xff]
        %v199 = vld [vmem:[%s169 + $0xd0] sm:$0xff]
        %v200 = vld [vmem:[%s169 + $0xd8] sm:$0xff]
        %v201 = vld [vmem:[%s169 + $0xe0] sm:$0xff]
        %v202 = vld [vmem:[%s169 + $0xe8] sm:$0xff]
        %v203 = vld [vmem:[%s169 + $0xf0] sm:$0xff]
        %v204 = vld [vmem:[%s169 + $0xf8] sm:$0xff]
        %v205 = vpack.c.bf16 %v174, %v173
        %v206 = vpack.c.bf16 %v176, %v175
        %v207 = vpack.c.bf16 %v178, %v177
        %v208 = vpack.c.bf16 %v180, %v179
        %v209 = vpack.c.bf16 %v182, %v181
        %v210 = vpack.c.bf16 %v184, %v183
        %v211 = vpack.c.bf16 %v186, %v185
        %v212 = vpack.c.bf16 %v188, %v187
        %v213 = vpack.c.bf16 %v190, %v189
        %v214 = vpack.c.bf16 %v192, %v191
        %v215 = vpack.c.bf16 %v194, %v193
        %v216 = vpack.c.bf16 %v196, %v195
        %v217 = vpack.c.bf16 %v198, %v197
        %v218 = vpack.c.bf16 %v200, %v199
        %v219 = vpack.c.bf16 %v202, %v201
        %v220 = vpack.c.bf16 %v204, %v203
        %v221 = vld [vmem:[%s1] sm:$0xf]
        %v222 = vld [vmem:[%s1 + $0x4] sm:$0xf]
        %v223 = vld [vmem:[%s1 + $0x8] sm:$0xf]
        %v224 = vld [vmem:[%s1 + $0xc] sm:$0xf]
        %v225 = vld [vmem:[%s1 + $0x10] sm:$0xf]
        %v226 = vld [vmem:[%s1 + $0x14] sm:$0xf]
        %v227 = vld [vmem:[%s1 + $0x18] sm:$0xf]
        %v228 = vld [vmem:[%s1 + $0x1c] sm:$0xf]
        %v229 = vld [vmem:[%s1 + $0x20] sm:$0xf]
        %v230 = vld [vmem:[%s1 + $0x24] sm:$0xf]
        %v231 = vld [vmem:[%s1 + $0x28] sm:$0xf]
        %v232 = vld [vmem:[%s1 + $0x2c] sm:$0xf]
        %v233 = vld [vmem:[%s1 + $0x30] sm:$0xf]
        %v234 = vld [vmem:[%s1 + $0x34] sm:$0xf]
        %v235 = vld [vmem:[%s1 + $0x38] sm:$0xf]
        %v236 = vld [vmem:[%s1 + $0x3c] sm:$0xf]
        %v237 = vld [vmem:[%s2] sm:$0x1]
        %v239 = vlaneseq
        %v240 = vshrl.u32 %v239, 7
        %v241 = vsub.s32 0, %v240
        %v242 = vrot.slane %v237, %v241
        %v260 = vunpack.c.l.b16 %v221
        %v261 = vunpack.c.l.b16 %v222
        %v262 = vunpack.c.l.b16 %v223
        %v263 = vunpack.c.l.b16 %v224
        %v264 = vunpack.c.l.b16 %v225
        %v265 = vunpack.c.l.b16 %v226
        %v266 = vunpack.c.l.b16 %v227
        %v267 = vunpack.c.l.b16 %v228
        %v268 = vunpack.c.l.b16 %v229
        %v269 = vunpack.c.l.b16 %v230
        %v270 = vunpack.c.l.b16 %v231
        %v271 = vunpack.c.l.b16 %v232
        %v272 = vunpack.c.l.b16 %v233
        %v273 = vunpack.c.l.b16 %v234
        %v274 = vunpack.c.l.b16 %v235
        %v275 = vunpack.c.l.b16 %v236
        %v276 = vpack.c.b16 %v261, %v260
        %v277 = vpack.c.b16 %v263, %v262
        %v278 = vpack.c.b16 %v265, %v264
        %v279 = vpack.c.b16 %v267, %v266
        %v280 = vpack.c.b16 %v269, %v268
        %v281 = vpack.c.b16 %v271, %v270
        %v282 = vpack.c.b16 %v273, %v272
        %v283 = vpack.c.b16 %v275, %v274
        %292 = vmatprep.subr.bf16.mxu0 0
        %293 = vmatpush1.bf16.msra.mxu0 %v276
        %294 = vmatprep.subr.bf16.mxu0 0
        %295 = vmatpush1.bf16.msra.mxu0 %v277
        %296 = vmatprep.subr.bf16.mxu0 0
        %297 = vmatpush1.bf16.msra.mxu0 %v278
        %298 = vmatprep.subr.bf16.mxu0 0
        %299 = vmatpush1.bf16.msra.mxu0 %v279
        %300 = vmatprep.subr.bf16.mxu0 0
        %301 = vmatpush1.bf16.msra.mxu0 %v280
        %302 = vmatprep.subr.bf16.mxu0 0
        %303 = vmatpush1.bf16.msra.mxu0 %v281
        %304 = vmatprep.subr.bf16.mxu0 0
        %305 = vmatpush1.bf16.msra.mxu0 %v282
        %306 = vmatprep.subr.bf16.mxu0 0
        %307 = vmatpush1.bf16.msra.mxu0 %v283
        %308 = vmatprep.subr.bf16.mxu0 0
        %309 = vmatpush1.bf16.msra.mxu0 0
        %310 = vmatprep.subr.bf16.mxu0 0
        %311 = vmatpush1.bf16.msra.mxu0 0
        %312 = vmatprep.subr.bf16.mxu0 0
        %313 = vmatpush1.bf16.msra.mxu0 0
        %314 = vmatprep.subr.bf16.mxu0 0
        %315 = vmatpush1.bf16.msra.mxu0 0
        %316 = vmatprep.subr.bf16.mxu0 0
        %317 = vmatpush1.bf16.msra.mxu0 0
        %318 = vmatprep.subr.bf16.mxu0 0
        %319 = vmatpush1.bf16.msra.mxu0 0
        %320 = vmatprep.subr.bf16.mxu0 0
        %321 = vmatpush1.bf16.msra.mxu0 0
        %322 = vmatprep.subr.bf16.mxu0 0
        %323 = vmatpush1.bf16.msra.mxu0 0
        %324 = vmatprep.mubr.bf16.mxu0 0
        %325 = vmatmul.mubr.bf16.gmra.mrb[0].mxu0 %v205
        %v326 = vpop.f32.mrb[0].mxu0
        %v327 = vadd.f32 %v242, %v326
        %v328 = vpop.f32.mrb[0].mxu0
        %v329 = vpop.f32.mrb[0].mxu0
        %v330 = vadd.f32 %v242, %v329
        %v331 = vpop.f32.mrb[0].mxu0
        %332 = vmatprep.mubr.bf16.mxu0 0
        %333 = vmatmul.mubr.bf16.gmra.mrb[0].mxu0 %v206
        %v334 = vpop.f32.mrb[0].mxu0
        %v335 = vadd.f32 %v242, %v334
        %v336 = vpop.f32.mrb[0].mxu0
        %v337 = vpop.f32.mrb[0].mxu0
        %v338 = vadd.f32 %v242, %v337
        %v339 = vpop.f32.mrb[0].mxu0
        %340 = vmatprep.mubr.bf16.mxu0 0
        %341 = vmatmul.mubr.bf16.gmra.mrb[0].mxu0 %v207
        %v342 = vpop.f32.mrb[0].mxu0
        %v343 = vadd.f32 %v242, %v342
        %v344 = vpop.f32.mrb[0].mxu0
        %v345 = vpop.f32.mrb[0].mxu0
        %v346 = vadd.f32 %v242, %v345
        %v347 = vpop.f32.mrb[0].mxu0
        %348 = vmatprep.mubr.bf16.mxu0 0
        %349 = vmatmul.mubr.bf16.gmra.mrb[0].mxu0 %v208
        %v350 = vpop.f32.mrb[0].mxu0
        %v351 = vadd.f32 %v242, %v350
        %v352 = vpop.f32.mrb[0].mxu0
        %v353 = vpop.f32.mrb[0].mxu0
        %v354 = vadd.f32 %v242, %v353
        %v355 = vpop.f32.mrb[0].mxu0
        %356 = vmatprep.mubr.bf16.mxu0 0
        %357 = vmatmul.mubr.bf16.gmra.mrb[0].mxu0 %v209
        %v358 = vpop.f32.mrb[0].mxu0
        %v359 = vadd.f32 %v242, %v358
        %v360 = vpop.f32.mrb[0].mxu0
        %v361 = vpop.f32.mrb[0].mxu0
        %v362 = vadd.f32 %v242, %v361
        %v363 = vpop.f32.mrb[0].mxu0
        %364 = vmatprep.mubr.bf16.mxu0 0
        %365 = vmatmul.mubr.bf16.gmra.mrb[0].mxu0 %v210
        %v366 = vpop.f32.mrb[0].mxu0
        %v367 = vadd.f32 %v242, %v366
        %v368 = vpop.f32.mrb[0].mxu0
        %v369 = vpop.f32.mrb[0].mxu0
        %v370 = vadd.f32 %v242, %v369
        %v371 = vpop.f32.mrb[0].mxu0
        %372 = vmatprep.mubr.bf16.mxu0 0
        %373 = vmatmul.mubr.bf16.gmra.mrb[0].mxu0 %v211
        %v374 = vpop.f32.mrb[0].mxu0
        %v375 = vadd.f32 %v242, %v374
        %v376 = vpop.f32.mrb[0].mxu0
        %v377 = vpop.f32.mrb[0].mxu0
        %v378 = vadd.f32 %v242, %v377
        %v379 = vpop.f32.mrb[0].mxu0
        %380 = vmatprep.mubr.bf16.mxu0 0
        %381 = vmatmul.mubr.bf16.gmra.mrb[0].mxu0 %v212
        %v382 = vpop.f32.mrb[0].mxu0
        %v383 = vadd.f32 %v242, %v382
        %v384 = vpop.f32.mrb[0].mxu0
        %v385 = vpop.f32.mrb[0].mxu0
        %v386 = vadd.f32 %v242, %v385
        %v387 = vpop.f32.mrb[0].mxu0
        %388 = vmatprep.mubr.bf16.mxu0 0
        %389 = vmatmul.mubr.bf16.gmra.mrb[0].mxu0 %v213
        %v390 = vpop.f32.mrb[0].mxu0
        %v391 = vadd.f32 %v242, %v390
        %v392 = vpop.f32.mrb[0].mxu0
        %v393 = vpop.f32.mrb[0].mxu0
        %v394 = vadd.f32 %v242, %v393
        %v395 = vpop.f32.mrb[0].mxu0
        %396 = vmatprep.mubr.bf16.mxu0 0
        %397 = vmatmul.mubr.bf16.gmra.mrb[0].mxu0 %v214
        %v398 = vpop.f32.mrb[0].mxu0
        %v399 = vadd.f32 %v242, %v398
        %v400 = vpop.f32.mrb[0].mxu0
        %v401 = vpop.f32.mrb[0].mxu0
        %v402 = vadd.f32 %v242, %v401
        %v403 = vpop.f32.mrb[0].mxu0
        %404 = vmatprep.mubr.bf16.mxu0 0
        %405 = vmatmul.mubr.bf16.gmra.mrb[0].mxu0 %v215
        %v406 = vpop.f32.mrb[0].mxu0
        %v407 = vadd.f32 %v242, %v406
        %v408 = vpop.f32.mrb[0].mxu0
        %v409 = vpop.f32.mrb[0].mxu0
        %v410 = vadd.f32 %v242, %v409
        %v411 = vpop.f32.mrb[0].mxu0
        %412 = vmatprep.mubr.bf16.mxu0 0
        %413 = vmatmul.mubr.bf16.gmra.mrb[0].mxu0 %v216
        %v414 = vpop.f32.mrb[0].mxu0
        %v415 = vadd.f32 %v242, %v414
        %v416 = vpop.f32.mrb[0].mxu0
        %v417 = vpop.f32.mrb[0].mxu0
        %v418 = vadd.f32 %v242, %v417
        %v419 = vpop.f32.mrb[0].mxu0
        %420 = vmatprep.mubr.bf16.mxu0 0
        %421 = vmatmul.mubr.bf16.gmra.mrb[0].mxu0 %v217
        %v422 = vpop.f32.mrb[0].mxu0
        %v423 = vadd.f32 %v242, %v422
        %v424 = vpop.f32.mrb[0].mxu0
        %v425 = vpop.f32.mrb[0].mxu0
        %v426 = vadd.f32 %v242, %v425
        %v427 = vpop.f32.mrb[0].mxu0
        %428 = vmatprep.mubr.bf16.mxu0 0
        %429 = vmatmul.mubr.bf16.gmra.mrb[0].mxu0 %v218
        %v430 = vpop.f32.mrb[0].mxu0
        %v431 = vadd.f32 %v242, %v430
        %v432 = vpop.f32.mrb[0].mxu0
        %v433 = vpop.f32.mrb[0].mxu0
        %v434 = vadd.f32 %v242, %v433
        %v435 = vpop.f32.mrb[0].mxu0
        %436 = vmatprep.mubr.bf16.mxu0 0
        %437 = vmatmul.mubr.bf16.gmra.mrb[0].mxu0 %v219
        %v438 = vpop.f32.mrb[0].mxu0
        %v439 = vadd.f32 %v242, %v438
        %v440 = vpop.f32.mrb[0].mxu0
        %v441 = vpop.f32.mrb[0].mxu0
        %v442 = vadd.f32 %v242, %v441
        %v443 = vpop.f32.mrb[0].mxu0
        %444 = vmatprep.mubr.bf16.mxu0 0
        %445 = vmatmul.mubr.bf16.gmra.mrb[0].mxu0 %v220
        %v446 = vpop.f32.mrb[0].mxu0
        %v447 = vadd.f32 %v242, %v446
        %v448 = vpop.f32.mrb[0].mxu0
        %v449 = vpop.f32.mrb[0].mxu0
        %v450 = vadd.f32 %v242, %v449
        %v451 = vpop.f32.mrb[0].mxu0
        %452 = vdwg.mxu0
        %453 = vst [vmem:[%s164] sm:$0xff] %v327
        %454 = vst [vmem:[%s164 + $0x8] sm:$0xff] %v330
        %455 = vst [vmem:[%s164 + $0x10] sm:$0xff] %v335
        %456 = vst [vmem:[%s164 + $0x18] sm:$0xff] %v338
        %457 = vst [vmem:[%s164 + $0x20] sm:$0xff] %v343
        %458 = vst [vmem:[%s164 + $0x28] sm:$0xff] %v346
        %459 = vst [vmem:[%s164 + $0x30] sm:$0xff] %v351
        %460 = vst [vmem:[%s164 + $0x38] sm:$0xff] %v354
        %461 = vst [vmem:[%s164 + $0x40] sm:$0xff] %v359
        %462 = vst [vmem:[%s164 + $0x48] sm:$0xff] %v362
        %463 = vst [vmem:[%s164 + $0x50] sm:$0xff] %v367
        %464 = vst [vmem:[%s164 + $0x58] sm:$0xff] %v370
        %465 = vst [vmem:[%s164 + $0x60] sm:$0xff] %v375
        %466 = vst [vmem:[%s164 + $0x68] sm:$0xff] %v378
        %467 = vst [vmem:[%s164 + $0x70] sm:$0xff] %v383
        %468 = vst [vmem:[%s164 + $0x78] sm:$0xff] %v386
        %469 = vst [vmem:[%s164 + $0x80] sm:$0xff] %v391
        %470 = vst [vmem:[%s164 + $0x88] sm:$0xff] %v394
        %471 = vst [vmem:[%s164 + $0x90] sm:$0xff] %v399
        %472 = vst [vmem:[%s164 + $0x98] sm:$0xff] %v402
        %473 = vst [vmem:[%s164 + $0xa0] sm:$0xff] %v407
        %474 = vst [vmem:[%s164 + $0xa8] sm:$0xff] %v410
        %475 = vst [vmem:[%s164 + $0xb0] sm:$0xff] %v415
        %476 = vst [vmem:[%s164 + $0xb8] sm:$0xff] %v418
        %477 = vst [vmem:[%s164 + $0xc0] sm:$0xff] %v423
        %478 = vst [vmem:[%s164 + $0xc8] sm:$0xff] %v426
        %479 = vst [vmem:[%s164 + $0xd0] sm:$0xff] %v431
        %480 = vst [vmem:[%s164 + $0xd8] sm:$0xff] %v434
        %481 = vst [vmem:[%s164 + $0xe0] sm:$0xff] %v439
        %482 = vst [vmem:[%s164 + $0xe8] sm:$0xff] %v442
        %483 = vst [vmem:[%s164 + $0xf0] sm:$0xff] %v447
        %484 = vst [vmem:[%s164 + $0xf8] sm:$0xff] %v450
        %s485 = sand.u32 %s93, 1
        %s486 = scalar_lea.sflag [#allocation3], %s485
        %s487 = sand.u32 %s93, 1
        %s488 = smul.addr %s487, 256
        %s489 = scalar_lea.vmem [#allocation2], %s488
        // Predicated region
        $region33: #{cross_modal_attention.1} parent=31 // pred_check
          %p490 = pneg %p103
        $region34: #{cross_modal_attention.1} parent=31 // pred_check_branch
          %492 = sbr.rel (%p490) target = $region36
        $region35: #{cross_modal_attention.1} parent=31 // pred_region
          %s493 = smul.u32 32, %s17
          %s495 = ssub.s32 4096, 4096
          %496 = vsyncadd %s486, %s495
          %s497 = smul.addr %s493, 128
          %s498 = scalar_lea.hbm %s3, %s497
          %s499 = sshll.u32 %s489, 4
          %s500 = int_to_ptr.vmem [resolvable:$true] %s499
          %505 = dma.vmem_to_hbm [thread:$0]  %s500, 4096, %s498, %s486, 128, 128, 8
        $region36: #{cross_modal_attention.1} parent=31 // pred_fallthru
          _
      $region32: #{cross_modal_attention.1} parent=5 // pred_fallthru
        _
      %p506 = scmp.le.s32.totalorder 2, %s12
      // Predicated region
      $region37: #{cross_modal_attention.1} parent=5 // pred_check
        %p507 = pneg %p506
      $region38: #{cross_modal_attention.1} parent=5 // pred_check_branch
        %509 = sbr.rel (%p507) target = $region40
      $region39: #{cross_modal_attention.1} parent=5 // pred_region
        %s510 = ssub.s32 %s12, 2
        // Predicated region
        $region41: #{cross_modal_attention.1} parent=39 // pred_check
          %p511 = pneg %p109
        $region42: #{cross_modal_attention.1} parent=39 // pred_check_branch
          %513 = sbr.rel (%p511) target = $region44
        $region43: #{cross_modal_attention.1} parent=39 // pred_region
          %s514 = sand.u32 %s94, 1
          %s515 = scalar_lea.sflag [#allocation3], %s514
          %s516 = sand.u32 %s94, 1
          %s517 = smul.addr %s516, 256
          %s518 = scalar_lea.vmem [#allocation2], %s517
          %519 = dma.done %s515, 4096
        $region44: #{cross_modal_attention.1} parent=39 // pred_fallthru
          _
      $region40: #{cross_modal_attention.1} parent=5 // pred_fallthru
        _
    $region6: #{cross_modal_attention.1} parent=1 // loop_footer
      %s16 = sadd.s32 1, %s12
    $region7: #{cross_modal_attention.1} parent=1 // loop_footer_branch
      %11 = sbr.rel target = $region3
    $region8: #{cross_modal_attention.1} parent=1 // loop_exit
      _
    %520 = vsyncpa [#allocation3], 1
    %s521 = scalar_lea.sflag [#allocation3], 1
    %522 = vsyncpa %s521, 1

</llo_original>
